<compile_context>
chip_gen: v7x
topology: tpu7x:2x2x1
jax: 0.10.0
libtpu: 0.0.40
codegen_flags: <defaults>
</compile_context>

<pallas_src>
import numpy as np
import jax
import jax.numpy as jnp
from jax import lax
from jax.experimental import pallas as pl
from jax.experimental.pallas import tpu as pltpu


def _make_kernel(H, W, F, C, Cp, P):
    """P = lanes per block = (batches per block) * H * W."""

    def kernel(x_ref, mask_ref, w1_ref, w31_ref, b31_ref, w32_ref, b32_ref,
               w4_ref, o_ref):
        # x_ref   : (F*C, P)    (frame,channel) on sublanes, batch*HW on lanes
        # mask_ref: (9, P)      per-tap zero-padding masks (1.0 in, 0.0 out)
        # w1_ref  : (Cp, F*C)   conv1_1 weight (output channels padded to Cp)
        # w3x_ref : (Cp, 9*Cp)  conv3_x im2col weight [c_out, tap*Cp + c_in]
        # b3x_ref : (Cp, 1)     conv3_x bias (padded)
        # w4_ref  : (F, Cp)     conv1_2 weight
        # o_ref   : (Cp, P)     output; rows C..Cp are zero padding
        x = x_ref[...]                                             # (F*C, P) f32

        # ---- conv1_1: one MXU contraction over K = F*C ----------------------
        y = jnp.dot(w1_ref[...], x,
                    preferred_element_type=jnp.float32)            # (Cp, P)

        # ---- 3x3 conv (pad=1) as a single im2col contraction ----------------
        # Tap t = dy*3+dx reads the pixel at (row+dy-1, col+dx-1): a lane roll
        # by -((dy-1)*W + (dx-1)); the host-built mask zeroes every position
        # whose source pixel falls outside its own image, which also removes
        # any cross-batch leakage at block-internal batch seams.
        def conv3x3(y_in, wcol_ref, b_ref):
            slabs = []
            for dy in range(3):
                for dx in range(3):
                    t = dy * 3 + dx
                    off = (dy - 1) * W + (dx - 1)
                    if off == 0:
                        slabs.append(y_in)                # center: no roll/mask
                    else:
                        rolled = pltpu.roll(y_in, (-off) % P, axis=1)
                        slabs.append(rolled * mask_ref[t:t + 1, :])
            col = jnp.concatenate(slabs, axis=0)          # (9*Cp, P), 8-aligned
            return (jnp.dot(wcol_ref[...], col,
                            preferred_element_type=jnp.float32)
                    + b_ref[...])                         # (Cp, 1) broadcasts

        y = conv3x3(y, w31_ref, b31_ref)
        y = conv3x3(y, w32_ref, b32_ref)

        # ---- conv1_2: Cp -> F, frames land on sublanes -----------------------
        logits = jnp.dot(w4_ref[...], y,
                         preferred_element_type=jnp.float32)       # (F, P)

        # ---- softmax over the frame (sublane) axis, all f32 ------------------
        m = jnp.max(logits, axis=0, keepdims=True)                 # (1, P)
        e = jnp.exp(logits - m)                                    # (F, P)
        s = jnp.sum(e, axis=0, keepdims=True)                      # (1, P)
        att = e * pl.reciprocal(s, approx=True)                    # (F, P)

        # ---- frame-weighted sum of the input ---------------------------------
        # F is tiny and the C=4 sublane groups are not 8-aligned, so a reshaped
        # (F, C, P) broadcast would only materialize copies; keep the short
        # static loop of lane-aligned VPU FMAs.
        out = att[0:1, :] * x[0:C, :]
        for f in range(1, F):
            out = out + att[f:f + 1, :] * x[f * C:(f + 1) * C, :]
        if Cp > C:
            out = jnp.concatenate(
                [out, jnp.zeros((Cp - C, P), jnp.float32)], axis=0)
        o_ref[...] = out.astype(o_ref.dtype)

    return kernel


def att_in_forward(x, params):
    """x: (B, F, C, H, W) float32 (PyTorch layout).  Returns (B, C, H, W)."""
    B, F, C, H, W = x.shape
    HW = H * W
    Cp = ((C + 7) // 8) * 8                 # channels rounded up to full sublanes
    w1, w31, b31, w32, b32, w4 = params

    # ---- host-side layout plumbing (no compute) ------------------------------
    # Batch onto the lane axis: (B,F,C,H,W) -> (F,C,B,H,W) -> (F*C, B*HW).
    xk = jnp.transpose(x, (1, 2, 0, 3, 4)).reshape(F * C, B * HW)

    # Static 3x3 zero-padding masks (one row per tap), tiled per batch image.
    q = np.arange(HW)
    row, col = q // W, q % W
    masks_np = np.zeros((9, HW), np.float32)
    for dy in range(3):
        for dx in range(3):
            ok = ((row + dy - 1 >= 0) & (row + dy - 1 <= H - 1) &
                  (col + dx - 1 >= 0) & (col + dx - 1 <= W - 1))
            masks_np[dy * 3 + dx] = ok.astype(np.float32)
    masks = jnp.asarray(np.tile(masks_np, (1, B)))                  # (9, B*HW)

    # Weights: pad internal channels C -> Cp with zeros and pre-assemble the
    # 3x3 im2col weights (tap-major along K), all host-side.
    w1p = jnp.zeros((Cp, F * C), jnp.float32).at[:C].set(w1)

    def im2col_weight(w3):                                          # (3,3,Cin,Cout)
        wc = jnp.zeros((Cp, 9 * Cp), jnp.float32)
        for dy in range(3):
            for dx in range(3):
                t = dy * 3 + dx
                wc = wc.at[:C, t * Cp:t * Cp + C].set(w3[dy, dx].T)
        return wc

    w31c, w32c = im2col_weight(w31), im2col_weight(w32)
    b31p = jnp.zeros((Cp, 1), jnp.float32).at[:C, 0].set(b31)
    b32p = jnp.zeros((Cp, 1), jnp.float32).at[:C, 0].set(b32)
    w4p = jnp.zeros((F, Cp), jnp.float32).at[:, :C].set(w4)

    # >=2 "parallel" blocks feed v7x's two TensorCores; at most 2 large steps
    # keeps per-step overhead negligible on single-core v5e/v6e.
    nb = 2 if (B >= 2 and B % 2 == 0) else 1
    GB = B // nb
    P = GB * HW

    flops = B * HW * (2 * Cp * F * C          # conv1_1
                      + 2 * 2 * Cp * 9 * Cp   # conv3_1 + conv3_2 (im2col)
                      + 2 * F * Cp            # conv1_2
                      + 2 * F * C             # weighted sum
                      + 6 * F)                # softmax misc
    bytes_accessed = 4 * (xk.size + masks.size + Cp * B * HW
                          + w1p.size + w31c.size + w32c.size
                          + b31p.size + b32p.size + w4p.size)

    kernel = _make_kernel(H, W, F, C, Cp, P)
    out = pl.pallas_call(
        kernel,
        out_shape=jax.ShapeDtypeStruct((Cp, B * HW), x.dtype),
        grid_spec=pltpu.PrefetchScalarGridSpec(
            num_scalar_prefetch=0,
            grid=(nb,),
            in_specs=[
                pl.BlockSpec((F * C, P), lambda b: (0, b)),    # x (lane-blocked)
                pl.BlockSpec((9, P), lambda b: (0, b)),        # tap masks
                pl.BlockSpec((Cp, F * C), lambda b: (0, 0)),   # resident weights
                pl.BlockSpec((Cp, 9 * Cp), lambda b: (0, 0)),
                pl.BlockSpec((Cp, 1), lambda b: (0, 0)),
                pl.BlockSpec((Cp, 9 * Cp), lambda b: (0, 0)),
                pl.BlockSpec((Cp, 1), lambda b: (0, 0)),
                pl.BlockSpec((F, Cp), lambda b: (0, 0)),
            ],
            out_specs=pl.BlockSpec((Cp, P), lambda b: (0, b)),
        ),
        compiler_params=pltpu.CompilerParams(
            dimension_semantics=("parallel",),
            # Block footprint is < 1 MiB; explicit budget fits v7x's 64 MiB
            # VMEM as well as v5e/v6e's 128 MiB.
            vmem_limit_bytes=32 * 1024 * 1024),
        cost_estimate=pl.CostEstimate(
            flops=int(flops),
            transcendentals=int(B * HW * (F + 1)),
            bytes_accessed=int(bytes_accessed)),
    )(xk, masks, w1p, w31c, b31p, w32c, b32p, w4p)

    # (Cp, B*HW) -> (B, C, H, W): drop channel padding, un-fold the batch.
    return jnp.transpose(out[:C].reshape(C, B, H, W), (1, 0, 2, 3))


def init_params(key, F, C):
    """Deterministic synthetic weights (shapes follow Att_in.__init__)."""
    k1, k2, k3, k4, k5, k6 = jax.random.split(key, 6)
    # conv1_1.weight: (C, F*C, 1, 1) -> stored (C, F*C)
    w1 = jax.random.normal(k1, (C, F * C), jnp.float32) / np.sqrt(F * C)
    # conv3_x.weight: (C, C, 3, 3) -> stored (kh, kw, c_in, c_out); bias (C,)
    w31 = jax.random.normal(k2, (3, 3, C, C), jnp.float32) / np.sqrt(9 * C)
    b31 = jax.random.normal(k3, (C,), jnp.float32) * 0.1
    w32 = jax.random.normal(k4, (3, 3, C, C), jnp.float32) / np.sqrt(9 * C)
    b32 = jax.random.normal(k5, (C,), jnp.float32) * 0.1
    # conv1_2.weight: (F, C, 1, 1) -> stored (F, C)
    w4 = jax.random.normal(k6, (F, C), jnp.float32) / np.sqrt(C)
    return w1, w31, b31, w32, b32, w4


def ref_forward(x, params):
    """Pure-JAX (lax.conv) reference matching the PyTorch module semantics."""
    B, F, C, H, W = x.shape
    w1, w31, b31, w32, b32, w4 = params
    dn = ('NCHW', 'OIHW', 'NCHW')
    xa = x.reshape(B, F * C, H, W)
    W1 = w1.reshape(C, F * C, 1, 1)
    y = lax.conv_general_dilated(xa, W1, (1, 1), 'VALID', dimension_numbers=dn)
    W31 = jnp.transpose(w31, (3, 2, 0, 1))
    y = lax.conv_general_dilated(y, W31, (1, 1), ((1, 1), (1, 1)),
                                 dimension_numbers=dn) + b31.reshape(1, C, 1, 1)
    W32 = jnp.transpose(w32, (3, 2, 0, 1))
    y = lax.conv_general_dilated(y, W32, (1, 1), ((1, 1), (1, 1)),
                                 dimension_numbers=dn) + b32.reshape(1, C, 1, 1)
    W4 = w4.reshape(F, C, 1, 1)
    att = lax.conv_general_dilated(y, W4, (1, 1), 'VALID', dimension_numbers=dn)
    att = jax.nn.softmax(att, axis=1)                       # (B, F, H, W)
    out = jnp.sum(att[:, :, None, :, :] * x, axis=1)        # (B, C, H, W)
    return out


if __name__ == "__main__":
    key = jax.random.PRNGKey(0)
    kx, kp = jax.random.split(key)
    B, F, C, H, W = 2, 3, 4, 16, 16       # batch, frame_num, dim, spatial
    x = jax.random.normal(kx, (B, F, C, H, W), jnp.float32)
    params = init_params(kp, F, C)

    out = jax.block_until_ready(att_in_forward(x, params))
    ref = jax.block_until_ready(ref_forward(x, params))

    assert out.shape == (B, C, H, W)
    np.testing.assert_allclose(np.asarray(out), np.asarray(ref),
                               rtol=2e-2, atol=2e-2)
    print("KERNEL_OK")
</pallas_src>

<mosaic_0001>
module attributes {stable_mosaic.version = 11 : i64} {
  func.func @kernel(%arg0: i32, %arg1: memref<12x256xf32, #tpu.memory_space<vmem>>, %arg2: memref<9x256xf32, #tpu.memory_space<vmem>>, %arg3: memref<8x12xf32, #tpu.memory_space<vmem>>, %arg4: memref<8x72xf32, #tpu.memory_space<vmem>>, %arg5: memref<8x1xf32, #tpu.memory_space<vmem>>, %arg6: memref<8x72xf32, #tpu.memory_space<vmem>>, %arg7: memref<8x1xf32, #tpu.memory_space<vmem>>, %arg8: memref<3x8xf32, #tpu.memory_space<vmem>>, %arg9: memref<8x256xf32, #tpu.memory_space<vmem>>) attributes {dimension_semantics = [#tpu.dimension_semantics<parallel>], iteration_bounds = array<i64: 2>, scalar_prefetch = 0 : i64, scratch_operands = 0 : i64, tpu.core_type = #tpu.core_type<tc>, window_params = [{transform_indices = @transform_0, window_bounds = array<i64: 12, 256>}, {transform_indices = @transform_1, window_bounds = array<i64: 9, 256>}, {pipeline_mode = #tpu.pipeline_mode<synchronous>, transform_indices = @transform_2, window_bounds = array<i64: 8, 12>}, {pipeline_mode = #tpu.pipeline_mode<synchronous>, transform_indices = @transform_3, window_bounds = array<i64: 8, 72>}, {pipeline_mode = #tpu.pipeline_mode<synchronous>, transform_indices = @transform_4, window_bounds = array<i64: 8, 1>}, {pipeline_mode = #tpu.pipeline_mode<synchronous>, transform_indices = @transform_5, window_bounds = array<i64: 8, 72>}, {pipeline_mode = #tpu.pipeline_mode<synchronous>, transform_indices = @transform_6, window_bounds = array<i64: 8, 1>}, {pipeline_mode = #tpu.pipeline_mode<synchronous>, transform_indices = @transform_7, window_bounds = array<i64: 3, 8>}, {transform_indices = @transform_8, window_bounds = array<i64: 8, 256>}]} {
    %c0 = arith.constant 0 : index
    %c0_0 = arith.constant 0 : index
    %0 = vector.load %arg1[%c0, %c0_0] : memref<12x256xf32, #tpu.memory_space<vmem>>, vector<12x256xf32>
    %c0_1 = arith.constant 0 : index
    %c0_2 = arith.constant 0 : index
    %1 = vector.load %arg3[%c0_1, %c0_2] : memref<8x12xf32, #tpu.memory_space<vmem>>, vector<8x12xf32>
    %cst = arith.constant dense<0.000000e+00> : vector<8x256xf32>
    %2 = tpu.matmul %1, %0, %cst {dimension_numbers = #tpu.dot_dimension_numbers<[1], [0], [0], [1], [0, 0, 1, 1], [], []>} : vector<8x12xf32>, vector<12x256xf32>, vector<8x256xf32> -> vector<8x256xf32>
    %c17_i32 = arith.constant 17 : i32
    %3 = tpu.dynamic_rotate %2 by %c17_i32 dim 1 : vector<8x256xf32>, i32 -> vector<8x256xf32>
    %c0_3 = arith.constant 0 : index
    %c0_4 = arith.constant 0 : index
    %4 = vector.load %arg2[%c0_3, %c0_4] : memref<9x256xf32, #tpu.memory_space<vmem>>, vector<1x256xf32>
    %5 = vector.broadcast %4 : vector<1x256xf32> to vector<8x256xf32>
    %6 = arith.mulf %3, %5 : vector<8x256xf32>
    %c16_i32 = arith.constant 16 : i32
    %7 = tpu.dynamic_rotate %2 by %c16_i32 dim 1 : vector<8x256xf32>, i32 -> vector<8x256xf32>
    %c1 = arith.constant 1 : index
    %c0_5 = arith.constant 0 : index
    %8 = vector.load %arg2[%c1, %c0_5] : memref<9x256xf32, #tpu.memory_space<vmem>>, vector<1x256xf32>
    %9 = vector.broadcast %8 : vector<1x256xf32> to vector<8x256xf32>
    %10 = arith.mulf %7, %9 : vector<8x256xf32>
    %c15_i32 = arith.constant 15 : i32
    %11 = tpu.dynamic_rotate %2 by %c15_i32 dim 1 : vector<8x256xf32>, i32 -> vector<8x256xf32>
    %c2 = arith.constant 2 : index
    %c0_6 = arith.constant 0 : index
    %12 = vector.load %arg2[%c2, %c0_6] : memref<9x256xf32, #tpu.memory_space<vmem>>, vector<1x256xf32>
    %13 = vector.broadcast %12 : vector<1x256xf32> to vector<8x256xf32>
    %14 = arith.mulf %11, %13 : vector<8x256xf32>
    %c1_i32 = arith.constant 1 : i32
    %15 = tpu.dynamic_rotate %2 by %c1_i32 dim 1 : vector<8x256xf32>, i32 -> vector<8x256xf32>
    %c3 = arith.constant 3 : index
    %c0_7 = arith.constant 0 : index
    %16 = vector.load %arg2[%c3, %c0_7] : memref<9x256xf32, #tpu.memory_space<vmem>>, vector<1x256xf32>
    %17 = vector.broadcast %16 : vector<1x256xf32> to vector<8x256xf32>
    %18 = arith.mulf %15, %17 : vector<8x256xf32>
    %c255_i32 = arith.constant 255 : i32
    %19 = tpu.dynamic_rotate %2 by %c255_i32 dim 1 : vector<8x256xf32>, i32 -> vector<8x256xf32>
    %c5 = arith.constant 5 : index
    %c0_8 = arith.constant 0 : index
    %20 = vector.load %arg2[%c5, %c0_8] : memref<9x256xf32, #tpu.memory_space<vmem>>, vector<1x256xf32>
    %21 = vector.broadcast %20 : vector<1x256xf32> to vector<8x256xf32>
    %22 = arith.mulf %19, %21 : vector<8x256xf32>
    %c241_i32 = arith.constant 241 : i32
    %23 = tpu.dynamic_rotate %2 by %c241_i32 dim 1 : vector<8x256xf32>, i32 -> vector<8x256xf32>
    %c6 = arith.constant 6 : index
    %c0_9 = arith.constant 0 : index
    %24 = vector.load %arg2[%c6, %c0_9] : memref<9x256xf32, #tpu.memory_space<vmem>>, vector<1x256xf32>
    %25 = vector.broadcast %24 : vector<1x256xf32> to vector<8x256xf32>
    %26 = arith.mulf %23, %25 : vector<8x256xf32>
    %c240_i32 = arith.constant 240 : i32
    %27 = tpu.dynamic_rotate %2 by %c240_i32 dim 1 : vector<8x256xf32>, i32 -> vector<8x256xf32>
    %c7 = arith.constant 7 : index
    %c0_10 = arith.constant 0 : index
    %28 = vector.load %arg2[%c7, %c0_10] : memref<9x256xf32, #tpu.memory_space<vmem>>, vector<1x256xf32>
    %29 = vector.broadcast %28 : vector<1x256xf32> to vector<8x256xf32>
    %30 = arith.mulf %27, %29 : vector<8x256xf32>
    %c239_i32 = arith.constant 239 : i32
    %31 = tpu.dynamic_rotate %2 by %c239_i32 dim 1 : vector<8x256xf32>, i32 -> vector<8x256xf32>
    %c8 = arith.constant 8 : index
    %c0_11 = arith.constant 0 : index
    %32 = vector.load %arg2[%c8, %c0_11] : memref<9x256xf32, #tpu.memory_space<vmem>>, vector<1x256xf32>
    %33 = vector.broadcast %32 : vector<1x256xf32> to vector<8x256xf32>
    %34 = arith.mulf %31, %33 : vector<8x256xf32>
    %35 = tpu.concatenate %6, %10, %14, %18, %2, %22, %26, %30, %34 in 0 : vector<8x256xf32>, vector<8x256xf32>, vector<8x256xf32>, vector<8x256xf32>, vector<8x256xf32>, vector<8x256xf32>, vector<8x256xf32>, vector<8x256xf32>, vector<8x256xf32> -> vector<72x256xf32>
    %c0_12 = arith.constant 0 : index
    %c0_13 = arith.constant 0 : index
    %36 = vector.load %arg4[%c0_12, %c0_13] : memref<8x72xf32, #tpu.memory_space<vmem>>, vector<8x72xf32>
    %cst_14 = arith.constant dense<0.000000e+00> : vector<8x256xf32>
    %37 = tpu.matmul %36, %35, %cst_14 {dimension_numbers = #tpu.dot_dimension_numbers<[1], [0], [0], [1], [0, 0, 1, 1], [], []>} : vector<8x72xf32>, vector<72x256xf32>, vector<8x256xf32> -> vector<8x256xf32>
    %c0_15 = arith.constant 0 : index
    %c0_16 = arith.constant 0 : index
    %38 = vector.load %arg5[%c0_15, %c0_16] : memref<8x1xf32, #tpu.memory_space<vmem>>, vector<8x1xf32>
    %39 = vector.broadcast %38 : vector<8x1xf32> to vector<8x256xf32>
    %40 = arith.addf %37, %39 : vector<8x256xf32>
    %c17_i32_17 = arith.constant 17 : i32
    %41 = tpu.dynamic_rotate %40 by %c17_i32_17 dim 1 : vector<8x256xf32>, i32 -> vector<8x256xf32>
    %c0_18 = arith.constant 0 : index
    %c0_19 = arith.constant 0 : index
    %42 = vector.load %arg2[%c0_18, %c0_19] : memref<9x256xf32, #tpu.memory_space<vmem>>, vector<1x256xf32>
    %43 = vector.broadcast %42 : vector<1x256xf32> to vector<8x256xf32>
    %44 = arith.mulf %41, %43 : vector<8x256xf32>
    %c16_i32_20 = arith.constant 16 : i32
    %45 = tpu.dynamic_rotate %40 by %c16_i32_20 dim 1 : vector<8x256xf32>, i32 -> vector<8x256xf32>
    %c1_21 = arith.constant 1 : index
    %c0_22 = arith.constant 0 : index
    %46 = vector.load %arg2[%c1_21, %c0_22] : memref<9x256xf32, #tpu.memory_space<vmem>>, vector<1x256xf32>
    %47 = vector.broadcast %46 : vector<1x256xf32> to vector<8x256xf32>
    %48 = arith.mulf %45, %47 : vector<8x256xf32>
    %c15_i32_23 = arith.constant 15 : i32
    %49 = tpu.dynamic_rotate %40 by %c15_i32_23 dim 1 : vector<8x256xf32>, i32 -> vector<8x256xf32>
    %c2_24 = arith.constant 2 : index
    %c0_25 = arith.constant 0 : index
    %50 = vector.load %arg2[%c2_24, %c0_25] : memref<9x256xf32, #tpu.memory_space<vmem>>, vector<1x256xf32>
    %51 = vector.broadcast %50 : vector<1x256xf32> to vector<8x256xf32>
    %52 = arith.mulf %49, %51 : vector<8x256xf32>
    %c1_i32_26 = arith.constant 1 : i32
    %53 = tpu.dynamic_rotate %40 by %c1_i32_26 dim 1 : vector<8x256xf32>, i32 -> vector<8x256xf32>
    %c3_27 = arith.constant 3 : index
    %c0_28 = arith.constant 0 : index
    %54 = vector.load %arg2[%c3_27, %c0_28] : memref<9x256xf32, #tpu.memory_space<vmem>>, vector<1x256xf32>
    %55 = vector.broadcast %54 : vector<1x256xf32> to vector<8x256xf32>
    %56 = arith.mulf %53, %55 : vector<8x256xf32>
    %c255_i32_29 = arith.constant 255 : i32
    %57 = tpu.dynamic_rotate %40 by %c255_i32_29 dim 1 : vector<8x256xf32>, i32 -> vector<8x256xf32>
    %c5_30 = arith.constant 5 : index
    %c0_31 = arith.constant 0 : index
    %58 = vector.load %arg2[%c5_30, %c0_31] : memref<9x256xf32, #tpu.memory_space<vmem>>, vector<1x256xf32>
    %59 = vector.broadcast %58 : vector<1x256xf32> to vector<8x256xf32>
    %60 = arith.mulf %57, %59 : vector<8x256xf32>
    %c241_i32_32 = arith.constant 241 : i32
    %61 = tpu.dynamic_rotate %40 by %c241_i32_32 dim 1 : vector<8x256xf32>, i32 -> vector<8x256xf32>
    %c6_33 = arith.constant 6 : index
    %c0_34 = arith.constant 0 : index
    %62 = vector.load %arg2[%c6_33, %c0_34] : memref<9x256xf32, #tpu.memory_space<vmem>>, vector<1x256xf32>
    %63 = vector.broadcast %62 : vector<1x256xf32> to vector<8x256xf32>
    %64 = arith.mulf %61, %63 : vector<8x256xf32>
    %c240_i32_35 = arith.constant 240 : i32
    %65 = tpu.dynamic_rotate %40 by %c240_i32_35 dim 1 : vector<8x256xf32>, i32 -> vector<8x256xf32>
    %c7_36 = arith.constant 7 : index
    %c0_37 = arith.constant 0 : index
    %66 = vector.load %arg2[%c7_36, %c0_37] : memref<9x256xf32, #tpu.memory_space<vmem>>, vector<1x256xf32>
    %67 = vector.broadcast %66 : vector<1x256xf32> to vector<8x256xf32>
    %68 = arith.mulf %65, %67 : vector<8x256xf32>
    %c239_i32_38 = arith.constant 239 : i32
    %69 = tpu.dynamic_rotate %40 by %c239_i32_38 dim 1 : vector<8x256xf32>, i32 -> vector<8x256xf32>
    %c8_39 = arith.constant 8 : index
    %c0_40 = arith.constant 0 : index
    %70 = vector.load %arg2[%c8_39, %c0_40] : memref<9x256xf32, #tpu.memory_space<vmem>>, vector<1x256xf32>
    %71 = vector.broadcast %70 : vector<1x256xf32> to vector<8x256xf32>
    %72 = arith.mulf %69, %71 : vector<8x256xf32>
    %73 = tpu.concatenate %44, %48, %52, %56, %40, %60, %64, %68, %72 in 0 : vector<8x256xf32>, vector<8x256xf32>, vector<8x256xf32>, vector<8x256xf32>, vector<8x256xf32>, vector<8x256xf32>, vector<8x256xf32>, vector<8x256xf32>, vector<8x256xf32> -> vector<72x256xf32>
    %c0_41 = arith.constant 0 : index
    %c0_42 = arith.constant 0 : index
    %74 = vector.load %arg6[%c0_41, %c0_42] : memref<8x72xf32, #tpu.memory_space<vmem>>, vector<8x72xf32>
    %cst_43 = arith.constant dense<0.000000e+00> : vector<8x256xf32>
    %75 = tpu.matmul %74, %73, %cst_43 {dimension_numbers = #tpu.dot_dimension_numbers<[1], [0], [0], [1], [0, 0, 1, 1], [], []>} : vector<8x72xf32>, vector<72x256xf32>, vector<8x256xf32> -> vector<8x256xf32>
    %c0_44 = arith.constant 0 : index
    %c0_45 = arith.constant 0 : index
    %76 = vector.load %arg7[%c0_44, %c0_45] : memref<8x1xf32, #tpu.memory_space<vmem>>, vector<8x1xf32>
    %77 = vector.broadcast %76 : vector<8x1xf32> to vector<8x256xf32>
    %78 = arith.addf %75, %77 : vector<8x256xf32>
    %c0_46 = arith.constant 0 : index
    %c0_47 = arith.constant 0 : index
    %79 = vector.load %arg8[%c0_46, %c0_47] : memref<3x8xf32, #tpu.memory_space<vmem>>, vector<3x8xf32>
    %cst_48 = arith.constant dense<0.000000e+00> : vector<3x256xf32>
    %80 = tpu.matmul %79, %78, %cst_48 {dimension_numbers = #tpu.dot_dimension_numbers<[1], [0], [0], [1], [0, 0, 1, 1], [], []>} : vector<3x8xf32>, vector<8x256xf32>, vector<3x256xf32> -> vector<3x256xf32>
    %cst_49 = arith.constant dense<0xFF800000> : vector<256xf32>
    %81 = vector.multi_reduction <maximumf>, %80, %cst_49 [0] : vector<3x256xf32> to vector<256xf32>
    %82 = vector.shape_cast %81 : vector<256xf32> to vector<1x256xf32>
    %83 = vector.broadcast %82 : vector<1x256xf32> to vector<3x256xf32>
    %84 = arith.subf %80, %83 : vector<3x256xf32>
    %85 = math.exp %84 : vector<3x256xf32>
    %cst_50 = arith.constant dense<0.000000e+00> : vector<256xf32>
    %86 = vector.multi_reduction <add>, %85, %cst_50 [0] : vector<3x256xf32> to vector<256xf32>
    %87 = vector.shape_cast %86 : vector<256xf32> to vector<1x256xf32>
    %88 = tpu.reciprocal %87 {approx = true} : vector<1x256xf32> -> vector<1x256xf32>
    %89 = vector.broadcast %88 : vector<1x256xf32> to vector<3x256xf32>
    %90 = arith.mulf %85, %89 : vector<3x256xf32>
    %91 = vector.extract_strided_slice %90 {offsets = [0, 0], sizes = [1, 256], strides = [1, 1]} : vector<3x256xf32> to vector<1x256xf32>
    %92 = vector.extract_strided_slice %0 {offsets = [0, 0], sizes = [4, 256], strides = [1, 1]} : vector<12x256xf32> to vector<4x256xf32>
    %93 = vector.broadcast %91 : vector<1x256xf32> to vector<4x256xf32>
    %94 = arith.mulf %93, %92 : vector<4x256xf32>
    %95 = vector.extract_strided_slice %90 {offsets = [1, 0], sizes = [1, 256], strides = [1, 1]} : vector<3x256xf32> to vector<1x256xf32>
    %96 = vector.extract_strided_slice %0 {offsets = [4, 0], sizes = [4, 256], strides = [1, 1]} : vector<12x256xf32> to vector<4x256xf32>
    %97 = vector.broadcast %95 : vector<1x256xf32> to vector<4x256xf32>
    %98 = arith.mulf %97, %96 : vector<4x256xf32>
    %99 = arith.addf %94, %98 : vector<4x256xf32>
    %100 = vector.extract_strided_slice %90 {offsets = [2, 0], sizes = [1, 256], strides = [1, 1]} : vector<3x256xf32> to vector<1x256xf32>
    %101 = vector.extract_strided_slice %0 {offsets = [8, 0], sizes = [4, 256], strides = [1, 1]} : vector<12x256xf32> to vector<4x256xf32>
    %102 = vector.broadcast %100 : vector<1x256xf32> to vector<4x256xf32>
    %103 = arith.mulf %102, %101 : vector<4x256xf32>
    %104 = arith.addf %99, %103 : vector<4x256xf32>
    %cst_51 = arith.constant 0.000000e+00 : f32
    %105 = vector.broadcast %cst_51 : f32 to vector<4x256xf32>
    %106 = tpu.concatenate %104, %105 in 0 : vector<4x256xf32>, vector<4x256xf32> -> vector<8x256xf32>
    %c0_52 = arith.constant 0 : index
    %c0_53 = arith.constant 0 : index
    %107 = vector.load %arg9[%c0_52, %c0_53] : memref<8x256xf32, #tpu.memory_space<vmem>>, vector<8x256xf32>
    tpu.vector_store %arg9[%c0_52, %c0_53], %106 {strides = array<i32>} : memref<8x256xf32, #tpu.memory_space<vmem>>, vector<8x256xf32>,
    return
  }
  func.func @transform_0(%arg0: i32) -> (i32, i32) {
    %c0_i32 = arith.constant 0 : i32
    %c0_i32_0 = arith.constant 0 : i32
    return %c0_i32, %arg0 : i32, i32
  }
  func.func @transform_1(%arg0: i32) -> (i32, i32) {
    %c0_i32 = arith.constant 0 : i32
    %c0_i32_0 = arith.constant 0 : i32
    return %c0_i32, %arg0 : i32, i32
  }
  func.func @transform_2(%arg0: i32) -> (i32, i32) {
    %c0_i32 = arith.constant 0 : i32
    %c0_i32_0 = arith.constant 0 : i32
    %c0_i32_1 = arith.constant 0 : i32
    return %c0_i32, %c0_i32_0 : i32, i32
  }
  func.func @transform_3(%arg0: i32) -> (i32, i32) {
    %c0_i32 = arith.constant 0 : i32
    %c0_i32_0 = arith.constant 0 : i32
    %c0_i32_1 = arith.constant 0 : i32
    return %c0_i32, %c0_i32_0 : i32, i32
  }
  func.func @transform_4(%arg0: i32) -> (i32, i32) {
    %c0_i32 = arith.constant 0 : i32
    %c0_i32_0 = arith.constant 0 : i32
    %c0_i32_1 = arith.constant 0 : i32
    return %c0_i32, %c0_i32_0 : i32, i32
  }
  func.func @transform_5(%arg0: i32) -> (i32, i32) {
    %c0_i32 = arith.constant 0 : i32
    %c0_i32_0 = arith.constant 0 : i32
    %c0_i32_1 = arith.constant 0 : i32
    return %c0_i32, %c0_i32_0 : i32, i32
  }
  func.func @transform_6(%arg0: i32) -> (i32, i32) {
    %c0_i32 = arith.constant 0 : i32
    %c0_i32_0 = arith.constant 0 : i32
    %c0_i32_1 = arith.constant 0 : i32
    return %c0_i32, %c0_i32_0 : i32, i32
  }
  func.func @transform_7(%arg0: i32) -> (i32, i32) {
    %c0_i32 = arith.constant 0 : i32
    %c0_i32_0 = arith.constant 0 : i32
    %c0_i32_1 = arith.constant 0 : i32
    return %c0_i32, %c0_i32_0 : i32, i32
  }
  func.func @transform_8(%arg0: i32) -> (i32, i32) {
    %c0_i32 = arith.constant 0 : i32
    %c0_i32_0 = arith.constant 0 : i32
    return %c0_i32, %arg0 : i32, i32
  }
}

</mosaic_0001>

<llo_original>
// kernel: tpu_custom_call.1
$region0: #{tpu_custom_call.1}
  #allocation0 [shape = 'u32[]', space=smem, size = 0x4, offset = 0x4, fixed_abs, tag = 'smem constant byte address 0x4 - core index']
  #allocation1 [shape = 'u32[144,128]{1,0:T(1,128)}', space=vmem, size = 0x12000, scoped, tag = 'internal scratch']
  %s0 = inlined_call_operand.hbm [shape: f32[12,512], index: 0, kind: input, shape index: {}]
  %s1 = inlined_call_operand.hbm [shape: f32[9,512], index: 1, kind: input, shape index: {}]
  %s2 = inlined_call_operand.vmem [shape: f32[8,12], index: 2, kind: input, shape index: {}]
  %s3 = inlined_call_operand.vmem [shape: f32[8,72], index: 3, kind: input, shape index: {}]
  %s4 = inlined_call_operand.vmem [shape: f32[8,1], index: 4, kind: input, shape index: {}]
  %s5 = inlined_call_operand.vmem [shape: f32[8,72], index: 5, kind: input, shape index: {}]
  %s6 = inlined_call_operand.vmem [shape: f32[8,1], index: 6, kind: input, shape index: {}]
  %s7 = inlined_call_operand.vmem [shape: f32[3,8], index: 7, kind: input, shape index: {}]
  %s8 = inlined_call_operand.hbm [shape: f32[8,512], index: 8, kind: output, shape index: {}]
  %s9 = sld [smem:[#allocation0]]
  $region73: #{tpu_custom_call.1} parent=0
    _
  %s11 = ssub.s32 1, %s9
  %s12 = scalar_select 0, %s11, %s9
  $region1: #{tpu_custom_call.1} parent=0
    #allocation2 [shape = 'u8[32768]{0}', space=vmem, size = 0x8000, scoped, tag = 'input window, operand 0']
    #allocation3 [shape = 's32[2]{0}', space=sflag, size = 0x8, scoped, tag = 'scoped memory for tpu_custom_call.1']
    #allocation4 [shape = 's32[2]{0}', space=sflag, size = 0x8, scoped, tag = 'scoped memory for tpu_custom_call.1']
    #allocation5 [shape = 'u8[32768]{0}', space=vmem, size = 0x8000, scoped, tag = 'input window, operand 1']
    #allocation6 [shape = 's32[2]{0}', space=sflag, size = 0x8, scoped, tag = 'scoped memory for tpu_custom_call.1']
    #allocation7 [shape = 'u8[16384]{0}', space=vmem, size = 0x4000, scoped, tag = 'output window, operand 0']
    %13 = vsyncpa [#allocation3], 0
    %s14 = scalar_lea.sflag [#allocation3], 1
    %15 = vsyncpa %s14, 0
    %16 = vsyncpa [#allocation6], 0
    %s17 = scalar_lea.sflag [#allocation6], 1
    %18 = vsyncpa %s17, 0
    %19 = vsyncpa [#allocation4], 0
    %s20 = scalar_lea.sflag [#allocation4], 1
    %21 = vsyncpa %s20, 0
    loop: start=0, step=1, limit=4
    $region2: #{tpu_custom_call.1} parent=1 // loop_pre_header
      _
    $region3: #{tpu_custom_call.1} parent=1 // loop_header
      %s23 = sphi 0, %s27
      %p24 = scmp.ge.s32.totalorder %s23, 4
      %s33 = sphi 0, %s35
      %s36 = sphi 0, %s33
      %s37 = sphi 0, %s36
      %s53 = sphi 0, %s37
      %s59 = sphi 0, %s61
      %s62 = sphi 0, %s59
      %s63 = sphi 0, %s62
      %s79 = sphi 0, %s63
      %s83 = sphi 0, %s83
      %s85 = sphi 0, %s83
      %s86 = sphi 0, %s85
      %s100 = sphi 0, %s86
      %s104 = sphi 0, %s104
      %s106 = sphi 0, %s104
      %s107 = sphi 0, %s106
      %s121 = sphi 0, %s107
      %s125 = sphi 0, %s125
      %s127 = sphi 0, %s125
      %s128 = sphi 0, %s127
      %s142 = sphi 0, %s128
      %s146 = sphi 0, %s146
      %s148 = sphi 0, %s146
      %s149 = sphi 0, %s148
      %s163 = sphi 0, %s149
      %s167 = sphi 0, %s167
      %s169 = sphi 0, %s167
      %s170 = sphi 0, %s169
      %s184 = sphi 0, %s170
      %s188 = sphi 0, %s188
      %s190 = sphi 0, %s188
      %s191 = sphi 0, %s190
      %s205 = sphi 0, %s191
      %s211 = sphi 0, %s213
      %s214 = sphi 0, %s211
      %s215 = sphi 0, %s214
      %s231 = sphi 0, %s215
    $region4: #{tpu_custom_call.1} parent=1 // loop_header_branch
      %26 = sbr.rel (%p24) target = $region8
    $region5: #{tpu_custom_call.1} parent=1 // loop_body
      %s28 = ssub.s32 %s23, 1
      %s29 = ssub.s32 %s23, 2
      %s30 = sadd.s32 %s23, 1
      %s31 = ssub.s32 %s23, %s30
      %p32 = scmp.eq.s32.totalorder %s31, 0
      %s34 = sadd.s32 %s33, 1
      %s35 = scalar_select %p32, %s33, %s34
      %p38 = pneg %p32
      %p39 = scmp.eq.s32.totalorder %s23, 1
      %p40 = por %p38, %p39
      %p41 = scmp.ne.s32.totalorder %s33, %s36
      %p42 = scmp.eq.s32.totalorder %s23, 0
      %p43 = por %p41, %p42
      %p44 = scmp.ne.s32.totalorder %s33, %s36
      %p45 = scmp.eq.s32.totalorder %s28, 1
      %p46 = por %p44, %p45
      %p47 = scmp.ne.s32.totalorder %s36, %s37
      %p48 = scmp.eq.s32.totalorder %s28, 0
      %p49 = por %p47, %p48
      %p50 = scmp.ne.s32.totalorder %s36, %s37
      %p51 = scmp.eq.s32.totalorder %s29, 1
      %p52 = por %p50, %p51
      %p54 = scmp.ne.s32.totalorder %s37, %s53
      %p55 = scmp.eq.s32.totalorder %s29, 0
      %p56 = por %p54, %p55
      %s57 = ssub.s32 %s23, %s30
      %p58 = scmp.eq.s32.totalorder %s57, 0
      %s60 = sadd.s32 %s59, 1
      %s61 = scalar_select %p58, %s59, %s60
      %p64 = pneg %p58
      %p65 = scmp.eq.s32.totalorder %s23, 1
      %p66 = por %p64, %p65
      %p67 = scmp.ne.s32.totalorder %s59, %s62
      %p68 = scmp.eq.s32.totalorder %s23, 0
      %p69 = por %p67, %p68
      %p70 = scmp.ne.s32.totalorder %s59, %s62
      %p71 = scmp.eq.s32.totalorder %s28, 1
      %p72 = por %p70, %p71
      %p73 = scmp.ne.s32.totalorder %s62, %s63
      %p74 = scmp.eq.s32.totalorder %s28, 0
      %p75 = por %p73, %p74
      %p76 = scmp.ne.s32.totalorder %s62, %s63
      %p77 = scmp.eq.s32.totalorder %s29, 1
      %p78 = por %p76, %p77
      %p80 = scmp.ne.s32.totalorder %s63, %s79
      %p81 = scmp.eq.s32.totalorder %s29, 0
      %p82 = por %p80, %p81
      %s84 = sadd.s32 %s83, 1
      %p87 = scmp.eq.s32.totalorder %s23, 1
      %p88 = scmp.ne.s32.totalorder %s83, %s85
      %p89 = scmp.eq.s32.totalorder %s23, 0
      %p90 = por %p88, %p89
      %p91 = scmp.ne.s32.totalorder %s83, %s85
      %p92 = scmp.eq.s32.totalorder %s28, 1
      %p93 = por %p91, %p92
      %p94 = scmp.ne.s32.totalorder %s85, %s86
      %p95 = scmp.eq.s32.totalorder %s28, 0
      %p96 = por %p94, %p95
      %p97 = scmp.ne.s32.totalorder %s85, %s86
      %p98 = scmp.eq.s32.totalorder %s29, 1
      %p99 = por %p97, %p98
      %p101 = scmp.ne.s32.totalorder %s86, %s100
      %p102 = scmp.eq.s32.totalorder %s29, 0
      %p103 = por %p101, %p102
      %s105 = sadd.s32 %s104, 1
      %p108 = scmp.eq.s32.totalorder %s23, 1
      %p109 = scmp.ne.s32.totalorder %s104, %s106
      %p110 = scmp.eq.s32.totalorder %s23, 0
      %p111 = por %p109, %p110
      %p112 = scmp.ne.s32.totalorder %s104, %s106
      %p113 = scmp.eq.s32.totalorder %s28, 1
      %p114 = por %p112, %p113
      %p115 = scmp.ne.s32.totalorder %s106, %s107
      %p116 = scmp.eq.s32.totalorder %s28, 0
      %p117 = por %p115, %p116
      %p118 = scmp.ne.s32.totalorder %s106, %s107
      %p119 = scmp.eq.s32.totalorder %s29, 1
      %p120 = por %p118, %p119
      %p122 = scmp.ne.s32.totalorder %s107, %s121
      %p123 = scmp.eq.s32.totalorder %s29, 0
      %p124 = por %p122, %p123
      %s126 = sadd.s32 %s125, 1
      %p129 = scmp.eq.s32.totalorder %s23, 1
      %p130 = scmp.ne.s32.totalorder %s125, %s127
      %p131 = scmp.eq.s32.totalorder %s23, 0
      %p132 = por %p130, %p131
      %p133 = scmp.ne.s32.totalorder %s125, %s127
      %p134 = scmp.eq.s32.totalorder %s28, 1
      %p135 = por %p133, %p134
      %p136 = scmp.ne.s32.totalorder %s127, %s128
      %p137 = scmp.eq.s32.totalorder %s28, 0
      %p138 = por %p136, %p137
      %p139 = scmp.ne.s32.totalorder %s127, %s128
      %p140 = scmp.eq.s32.totalorder %s29, 1
      %p141 = por %p139, %p140
      %p143 = scmp.ne.s32.totalorder %s128, %s142
      %p144 = scmp.eq.s32.totalorder %s29, 0
      %p145 = por %p143, %p144
      %s147 = sadd.s32 %s146, 1
      %p150 = scmp.eq.s32.totalorder %s23, 1
      %p151 = scmp.ne.s32.totalorder %s146, %s148
      %p152 = scmp.eq.s32.totalorder %s23, 0
      %p153 = por %p151, %p152
      %p154 = scmp.ne.s32.totalorder %s146, %s148
      %p155 = scmp.eq.s32.totalorder %s28, 1
      %p156 = por %p154, %p155
      %p157 = scmp.ne.s32.totalorder %s148, %s149
      %p158 = scmp.eq.s32.totalorder %s28, 0
      %p159 = por %p157, %p158
      %p160 = scmp.ne.s32.totalorder %s148, %s149
      %p161 = scmp.eq.s32.totalorder %s29, 1
      %p162 = por %p160, %p161
      %p164 = scmp.ne.s32.totalorder %s149, %s163
      %p165 = scmp.eq.s32.totalorder %s29, 0
      %p166 = por %p164, %p165
      %s168 = sadd.s32 %s167, 1
      %p171 = scmp.eq.s32.totalorder %s23, 1
      %p172 = scmp.ne.s32.totalorder %s167, %s169
      %p173 = scmp.eq.s32.totalorder %s23, 0
      %p174 = por %p172, %p173
      %p175 = scmp.ne.s32.totalorder %s167, %s169
      %p176 = scmp.eq.s32.totalorder %s28, 1
      %p177 = por %p175, %p176
      %p178 = scmp.ne.s32.totalorder %s169, %s170
      %p179 = scmp.eq.s32.totalorder %s28, 0
      %p180 = por %p178, %p179
      %p181 = scmp.ne.s32.totalorder %s169, %s170
      %p182 = scmp.eq.s32.totalorder %s29, 1
      %p183 = por %p181, %p182
      %p185 = scmp.ne.s32.totalorder %s170, %s184
      %p186 = scmp.eq.s32.totalorder %s29, 0
      %p187 = por %p185, %p186
      %s189 = sadd.s32 %s188, 1
      %p192 = scmp.eq.s32.totalorder %s23, 1
      %p193 = scmp.ne.s32.totalorder %s188, %s190
      %p194 = scmp.eq.s32.totalorder %s23, 0
      %p195 = por %p193, %p194
      %p196 = scmp.ne.s32.totalorder %s188, %s190
      %p197 = scmp.eq.s32.totalorder %s28, 1
      %p198 = por %p196, %p197
      %p199 = scmp.ne.s32.totalorder %s190, %s191
      %p200 = scmp.eq.s32.totalorder %s28, 0
      %p201 = por %p199, %p200
      %p202 = scmp.ne.s32.totalorder %s190, %s191
      %p203 = scmp.eq.s32.totalorder %s29, 1
      %p204 = por %p202, %p203
      %p206 = scmp.ne.s32.totalorder %s191, %s205
      %p207 = scmp.eq.s32.totalorder %s29, 0
      %p208 = por %p206, %p207
      %s209 = ssub.s32 %s23, %s30
      %p210 = scmp.eq.s32.totalorder %s209, 0
      %s212 = sadd.s32 %s211, 1
      %s213 = scalar_select %p210, %s211, %s212
      %p216 = pneg %p210
      %p217 = scmp.eq.s32.totalorder %s23, 1
      %p218 = por %p216, %p217
      %p219 = scmp.ne.s32.totalorder %s211, %s214
      %p220 = scmp.eq.s32.totalorder %s23, 0
      %p221 = por %p219, %p220
      %p222 = scmp.ne.s32.totalorder %s211, %s214
      %p223 = scmp.eq.s32.totalorder %s28, 1
      %p224 = por %p222, %p223
      %p225 = scmp.ne.s32.totalorder %s214, %s215
      %p226 = scmp.eq.s32.totalorder %s28, 0
      %p227 = por %p225, %p226
      %p228 = scmp.ne.s32.totalorder %s214, %s215
      %p229 = scmp.eq.s32.totalorder %s29, 1
      %p230 = por %p228, %p229
      %p232 = scmp.ne.s32.totalorder %s215, %s231
      %p233 = scmp.eq.s32.totalorder %s29, 0
      %p234 = por %p232, %p233
      %p235 = scmp.le.s32.totalorder 1, %s23
      %p236 = scmp.lt.s32.totalorder %s23, 3
      %p237 = pnand %p235, %p236
      %p238 = pneg %p237
      // Predicated region
      $region9: #{tpu_custom_call.1} parent=5 // pred_check
        _
      $region10: #{tpu_custom_call.1} parent=5 // pred_check_branch
        %240 = sbr.rel (%p237) target = $region12
      $region11: #{tpu_custom_call.1} parent=5 // pred_region
        %s241 = ssub.s32 %s23, 1
        // Predicated region
        $region13: #{tpu_custom_call.1} parent=11 // pred_check
          %p242 = pneg %p96
        $region14: #{tpu_custom_call.1} parent=11 // pred_check_branch
          %244 = sbr.rel (%p242) target = $region16
        $region15: #{tpu_custom_call.1} parent=11 // pred_region
          _
        $region16: #{tpu_custom_call.1} parent=11 // pred_fallthru
          _
        // Predicated region
        $region17: #{tpu_custom_call.1} parent=11 // pred_check
          %p245 = pneg %p117
        $region18: #{tpu_custom_call.1} parent=11 // pred_check_branch
          %247 = sbr.rel (%p245) target = $region20
        $region19: #{tpu_custom_call.1} parent=11 // pred_region
          _
        $region20: #{tpu_custom_call.1} parent=11 // pred_fallthru
          _
        // Predicated region
        $region21: #{tpu_custom_call.1} parent=11 // pred_check
          %p248 = pneg %p138
        $region22: #{tpu_custom_call.1} parent=11 // pred_check_branch
          %250 = sbr.rel (%p248) target = $region24
        $region23: #{tpu_custom_call.1} parent=11 // pred_region
          _
        $region24: #{tpu_custom_call.1} parent=11 // pred_fallthru
          _
        // Predicated region
        $region25: #{tpu_custom_call.1} parent=11 // pred_check
          %p251 = pneg %p159
        $region26: #{tpu_custom_call.1} parent=11 // pred_check_branch
          %253 = sbr.rel (%p251) target = $region28
        $region27: #{tpu_custom_call.1} parent=11 // pred_region
          _
        $region28: #{tpu_custom_call.1} parent=11 // pred_fallthru
          _
        // Predicated region
        $region29: #{tpu_custom_call.1} parent=11 // pred_check
          %p254 = pneg %p180
        $region30: #{tpu_custom_call.1} parent=11 // pred_check_branch
          %256 = sbr.rel (%p254) target = $region32
        $region31: #{tpu_custom_call.1} parent=11 // pred_region
          _
        $region32: #{tpu_custom_call.1} parent=11 // pred_fallthru
          _
        // Predicated region
        $region33: #{tpu_custom_call.1} parent=11 // pred_check
          %p257 = pneg %p201
        $region34: #{tpu_custom_call.1} parent=11 // pred_check_branch
          %259 = sbr.rel (%p257) target = $region36
        $region35: #{tpu_custom_call.1} parent=11 // pred_region
          _
        $region36: #{tpu_custom_call.1} parent=11 // pred_fallthru
          _
      $region12: #{tpu_custom_call.1} parent=5 // pred_fallthru
        _
      %p260 = scmp.lt.s32.totalorder %s23, 2
      // Predicated region
      $region37: #{tpu_custom_call.1} parent=5 // pred_check
        %p261 = pneg %p260
      $region38: #{tpu_custom_call.1} parent=5 // pred_check_branch
        %263 = sbr.rel (%p261) target = $region40
      $region39: #{tpu_custom_call.1} parent=5 // pred_region
        // Predicated region
        $region41: #{tpu_custom_call.1} parent=39 // pred_check
          %p264 = pneg %p43
        $region42: #{tpu_custom_call.1} parent=39 // pred_check_branch
          %266 = sbr.rel (%p264) target = $region44
        $region43: #{tpu_custom_call.1} parent=39 // pred_region
          %s267 = sand.u32 %s33, 1
          %s268 = scalar_lea.sflag [#allocation3], %s267
          %s269 = sand.u32 %s33, 1
          %s270 = smul.addr %s269, 32
          %s271 = scalar_lea.vmem [#allocation2], %s270
          %s272 = smul.u32 2, %s23
          %s274 = ssub.s32 512, 512
          %275 = vsyncadd %s268, %s274
          %s276 = smul.addr %s272, 128
          %s277 = scalar_lea.hbm %s0, %s276
          %s278 = sshll.u32 %s271, 4
          %s279 = int_to_ptr.vmem [resolvable:$true] %s278
          %284 = dma.hbm_to_vmem [thread:$0]  %s277, 512, %s279, %s268, 512, 256, 16
        $region44: #{tpu_custom_call.1} parent=39 // pred_fallthru
          _
        // Predicated region
        $region45: #{tpu_custom_call.1} parent=39 // pred_check
          %p285 = pneg %p69
        $region46: #{tpu_custom_call.1} parent=39 // pred_check_branch
          %287 = sbr.rel (%p285) target = $region48
        $region47: #{tpu_custom_call.1} parent=39 // pred_region
          %s288 = sand.u32 %s59, 1
          %s289 = scalar_lea.sflag [#allocation6], %s288
          %s290 = sand.u32 %s59, 1
          %s291 = smul.addr %s290, 32
          %s292 = scalar_lea.vmem [#allocation5], %s291
          %s293 = smul.u32 2, %s23
          %s295 = ssub.s32 512, 512
          %296 = vsyncadd %s289, %s295
          %s297 = smul.addr %s293, 128
          %s298 = scalar_lea.hbm %s1, %s297
          %s299 = sshll.u32 %s292, 4
          %s300 = int_to_ptr.vmem [resolvable:$true] %s299
          %305 = dma.hbm_to_vmem [thread:$0]  %s298, 512, %s300, %s289, 512, 256, 16
        $region48: #{tpu_custom_call.1} parent=39 // pred_fallthru
          _
      $region40: #{tpu_custom_call.1} parent=5 // pred_fallthru
        _
      %p306 = scmp.le.s32.totalorder 1, %s23
      %p307 = scmp.lt.s32.totalorder %s23, 3
      %p308 = pnand %p306, %p307
      %p309 = pneg %p308
      // Predicated region
      $region49: #{tpu_custom_call.1} parent=5 // pred_check
        _
      $region50: #{tpu_custom_call.1} parent=5 // pred_check_branch
        %311 = sbr.rel (%p308) target = $region52
      $region51: #{tpu_custom_call.1} parent=5 // pred_region
        %s312 = ssub.s32 %s23, 1
        %s313 = sand.u32 %s36, 1
        %s314 = scalar_lea.sflag [#allocation3], %s313
        %s315 = sand.u32 %s36, 1
        %s316 = smul.addr %s315, 32
        %s317 = scalar_lea.vmem [#allocation2], %s316
        // Predicated region
        $region53: #{tpu_custom_call.1} parent=51 // pred_check
          %p318 = pneg %p49
        $region54: #{tpu_custom_call.1} parent=51 // pred_check_branch
          %320 = sbr.rel (%p318) target = $region56
        $region55: #{tpu_custom_call.1} parent=51 // pred_region
          %321 = dma.done %s314, 512
        $region56: #{tpu_custom_call.1} parent=51 // pred_fallthru
          _
        %s322 = sand.u32 %s62, 1
        %s323 = scalar_lea.sflag [#allocation6], %s322
        %s324 = sand.u32 %s62, 1
        %s325 = smul.addr %s324, 32
        %s326 = scalar_lea.vmem [#allocation5], %s325
        // Predicated region
        $region57: #{tpu_custom_call.1} parent=51 // pred_check
          %p327 = pneg %p75
        $region58: #{tpu_custom_call.1} parent=51 // pred_check_branch
          %329 = sbr.rel (%p327) target = $region60
        $region59: #{tpu_custom_call.1} parent=51 // pred_region
          %330 = dma.done %s323, 512
        $region60: #{tpu_custom_call.1} parent=51 // pred_fallthru
          _
        %s331 = sand.u32 %s36, 1
        %s332 = scalar_lea.sflag [#allocation3], %s331
        %s333 = sand.u32 %s36, 1
        %s334 = smul.addr %s333, 32
        %s335 = scalar_lea.vmem [#allocation2], %s334
        %p336 = pneg %p49
        %p337 = pneg %p46
        %s338 = sand.u32 %s62, 1
        %s339 = scalar_lea.sflag [#allocation6], %s338
        %s340 = sand.u32 %s62, 1
        %s341 = smul.addr %s340, 32
        %s342 = scalar_lea.vmem [#allocation5], %s341
        %p343 = pneg %p75
        %p344 = pneg %p72
        %p345 = pneg %p96
        %p346 = pneg %p93
        %p347 = pneg %p117
        %p348 = pneg %p114
        %p349 = pneg %p138
        %p350 = pneg %p135
        %p351 = pneg %p159
        %p352 = pneg %p156
        %p353 = pneg %p180
        %p354 = pneg %p177
        %p355 = pneg %p201
        %p356 = pneg %p198
        %p357 = pneg %p227
        %p358 = pneg %p224
        %s359 = sand.u32 %s214, 1
        %s360 = scalar_lea.sflag [#allocation4], %s359
        %s361 = sand.u32 %s214, 1
        %s362 = smul.addr %s361, 16
        %s363 = scalar_lea.vmem [#allocation7], %s362
        %s364 = smul.u32 2, %s28
        %s365 = smul.u32 2, %s28
        %s366 = smul.u32 2, %s28
        %v367 = vld [vmem:[%s317] sm:$0xff]
        %v368 = vld [vmem:[%s317 + $0x8] sm:$0xff]
        %v369 = vld [vmem:[%s317 + $0x10] sm:$0xf]
        %v370 = vld [vmem:[%s317 + $0x18] sm:$0xf]
        %v371 = vld [vmem:[%s2] sm:$0xff]
        %vm372 = vcmask 97280
        %v374 = vsel %vm372, %v371, 0
        %vm376 = vcmask 1043456
        %v378 = vsel %vm376, %v369, 0
        %v381 = vsel %vm376, %v370, 0
        %383 = vmatprep.subr.mxu0 %v368
        %384 = vmatpush1.msra.mxu0 %v367
        %385 = vmatprep.subr.mxu0 %v381
        %386 = vmatpush1.msra.mxu0 %v378
        %387 = vmatprep.subr.mxu0 0.0
        %388 = vmatpush1.msra.mxu0 0.0
        %389 = vmatprep.subr.mxu0 0.0
        %390 = vmatpush1.msra.mxu0 0.0
        %391 = vmatprep.subr.mxu0 0.0
        %392 = vmatpush1.msra.mxu0 0.0
        %393 = vmatprep.subr.mxu0 0.0
        %394 = vmatpush1.msra.mxu0 0.0
        %395 = vmatprep.subr.mxu0 0.0
        %396 = vmatpush1.msra.mxu0 0.0
        %397 = vmatprep.subr.mxu0 0.0
        %398 = vmatpush1.msra.mxu0 0.0
        %399 = vmatprep.subr.mxu0 0.0
        %400 = vmatpush1.msra.mxu0 0.0
        %401 = vmatprep.subr.mxu0 0.0
        %402 = vmatpush1.msra.mxu0 0.0
        %403 = vmatprep.subr.mxu0 0.0
        %404 = vmatpush1.msra.mxu0 0.0
        %405 = vmatprep.subr.mxu0 0.0
        %406 = vmatpush1.msra.mxu0 0.0
        %407 = vmatprep.subr.mxu0 0.0
        %408 = vmatpush1.msra.mxu0 0.0
        %409 = vmatprep.subr.mxu0 0.0
        %410 = vmatpush1.msra.mxu0 0.0
        %411 = vmatprep.subr.mxu0 0.0
        %412 = vmatpush1.msra.mxu0 0.0
        %413 = vmatprep.subr.mxu0 0.0
        %414 = vmatpush1.msra.mxu0 0.0
        %415 = vmatprep.subr.mxu0 0.0
        %416 = vmatpush1.msra.mxu0 0.0
        %417 = vmatprep.subr.mxu0 0.0
        %418 = vmatpush1.msra.mxu0 0.0
        %419 = vmatprep.subr.mxu0 0.0
        %420 = vmatpush1.msra.mxu0 0.0
        %421 = vmatprep.subr.mxu0 0.0
        %422 = vmatpush1.msra.mxu0 0.0
        %423 = vmatprep.subr.mxu0 0.0
        %424 = vmatpush1.msra.mxu0 0.0
        %425 = vmatprep.subr.mxu0 0.0
        %426 = vmatpush1.msra.mxu0 0.0
        %427 = vmatprep.subr.mxu0 0.0
        %428 = vmatpush1.msra.mxu0 0.0
        %429 = vmatprep.subr.mxu0 0.0
        %430 = vmatpush1.msra.mxu0 0.0
        %431 = vmatprep.subr.mxu0 0.0
        %432 = vmatpush1.msra.mxu0 0.0
        %433 = vmatprep.subr.mxu0 0.0
        %434 = vmatpush1.msra.mxu0 0.0
        %435 = vmatprep.subr.mxu0 0.0
        %436 = vmatpush1.msra.mxu0 0.0
        %437 = vmatprep.subr.mxu0 0.0
        %438 = vmatpush1.msra.mxu0 0.0
        %439 = vmatprep.subr.mxu0 0.0
        %440 = vmatpush1.msra.mxu0 0.0
        %441 = vmatprep.subr.mxu0 0.0
        %442 = vmatpush1.msra.mxu0 0.0
        %443 = vmatprep.subr.mxu0 0.0
        %444 = vmatpush1.msra.mxu0 0.0
        %445 = vmatprep.subr.mxu0 0.0
        %446 = vmatpush1.msra.mxu0 0.0
        %447 = vmatprep.mubr.f32.mxu0 0.0
        %448 = vmatmul.mubr.f32.gmra.mrb[0].mxu0 %v374
        %v449 = vpop.f32.mrb[0].mxu0
        %v450 = vadd.f32 0.0, %v449
        %v451 = vpop.f32.mrb[0].mxu0
        %v452 = vadd.f32 0.0, %v451
        %453 = vdwg.mxu0
        %454 = vrot.lane.b32.xlu0 %v450, 17
        %v455 = vpop.permute.xlu0 %454
        %456 = vrot.lane.b32.xlu0 %v452, 17
        %v457 = vpop.permute.xlu0 %456
        %v458 = vlaneseq
        %v459 = vand.u32 %v458, 127
        %vm460 = vcmp.lt.s32.totalorder %v459, 17
        %v461 = vsel %vm460, %v455, %v457
        %v462 = vsel %vm460, %v457, %v455
        %v463 = vld [vmem:[%s326] ss:$8 sm:$0x3]
        %v465 = vlaneseq
        %v466 = vshrl.u32 %v465, 7
        %v467 = vsub.s32 0, %v466
        %v468 = vrot.slane %v463, %v467
        %v469 = vlaneseq
        %v470 = vshrl.u32 %v469, 7
        %v471 = vsub.s32 1, %v470
        %v472 = vrot.slane %v463, %v471
        %v475 = vmul.f32 %v462, %v468
        %v476 = vmul.f32 %v461, %v472
        %477 = vrot.lane.b32.xlu0 %v450, 16
        %v478 = vpop.permute.xlu0 %477
        %479 = vrot.lane.b32.xlu0 %v452, 16
        %v480 = vpop.permute.xlu0 %479
        %vm481 = vcmp.lt.s32.totalorder %v459, 16
        %v482 = vsel %vm481, %v478, %v480
        %v483 = vsel %vm481, %v480, %v478
        %s484 = scalar_lea.vmem %s326, 1 [#allocation5]
        %v485 = vld [vmem:[%s484] ss:$8 sm:$0x3]
        %v487 = vlaneseq
        %v488 = vshrl.u32 %v487, 7
        %v489 = vsub.s32 0, %v488
        %v490 = vrot.slane %v485, %v489
        %v491 = vlaneseq
        %v492 = vshrl.u32 %v491, 7
        %v493 = vsub.s32 1, %v492
        %v494 = vrot.slane %v485, %v493
        %v497 = vmul.f32 %v483, %v490
        %v498 = vmul.f32 %v482, %v494
        %499 = vrot.lane.b32.xlu0 %v450, 15
        %v500 = vpop.permute.xlu0 %499
        %501 = vrot.lane.b32.xlu0 %v452, 15
        %v502 = vpop.permute.xlu0 %501
        %vm503 = vcmp.lt.s32.totalorder %v459, 15
        %v504 = vsel %vm503, %v500, %v502
        %v505 = vsel %vm503, %v502, %v500
        %s506 = scalar_lea.vmem %s326, 2 [#allocation5]
        %v507 = vld [vmem:[%s506] ss:$8 sm:$0x3]
        %v509 = vlaneseq
        %v510 = vshrl.u32 %v509, 7
        %v511 = vsub.s32 0, %v510
        %v512 = vrot.slane %v507, %v511
        %v513 = vlaneseq
        %v514 = vshrl.u32 %v513, 7
        %v515 = vsub.s32 1, %v514
        %v516 = vrot.slane %v507, %v515
        %v519 = vmul.f32 %v505, %v512
        %v520 = vmul.f32 %v504, %v516
        %521 = vrot.lane.b32.xlu0 %v450, 1
        %v522 = vpop.permute.xlu0 %521
        %523 = vrot.lane.b32.xlu0 %v452, 1
        %v524 = vpop.permute.xlu0 %523
        %vm525 = vcmp.lt.s32.totalorder %v459, 1
        %v526 = vsel %vm525, %v522, %v524
        %v527 = vsel %vm525, %v524, %v522
        %s528 = scalar_lea.vmem %s326, 3 [#allocation5]
        %v529 = vld [vmem:[%s528] ss:$8 sm:$0x3]
        %v531 = vlaneseq
        %v532 = vshrl.u32 %v531, 7
        %v533 = vsub.s32 0, %v532
        %v534 = vrot.slane %v529, %v533
        %v535 = vlaneseq
        %v536 = vshrl.u32 %v535, 7
        %v537 = vsub.s32 1, %v536
        %v538 = vrot.slane %v529, %v537
        %v541 = vmul.f32 %v527, %v534
        %v542 = vmul.f32 %v526, %v538
        %543 = vrot.lane.b32.xlu0 %v450, 127
        %v544 = vpop.permute.xlu0 %543
        %545 = vrot.lane.b32.xlu0 %v452, 127
        %v546 = vpop.permute.xlu0 %545
        %vm547 = vcmp.lt.s32.totalorder %v459, 127
        %v548 = vsel %vm547, %v544, %v546
        %v549 = vsel %vm547, %v546, %v544
        %s550 = scalar_lea.vmem %s326, 5 [#allocation5]
        %v551 = vld [vmem:[%s550] ss:$8 sm:$0x3]
        %v553 = vlaneseq
        %v554 = vshrl.u32 %v553, 7
        %v555 = vsub.s32 0, %v554
        %v556 = vrot.slane %v551, %v555
        %v557 = vlaneseq
        %v558 = vshrl.u32 %v557, 7
        %v559 = vsub.s32 1, %v558
        %v560 = vrot.slane %v551, %v559
        %v563 = vmul.f32 %v548, %v556
        %v564 = vmul.f32 %v549, %v560
        %565 = vrot.lane.b32.xlu0 %v450, 113
        %v566 = vpop.permute.xlu0 %565
        %567 = vrot.lane.b32.xlu0 %v452, 113
        %v568 = vpop.permute.xlu0 %567
        %vm569 = vcmp.lt.s32.totalorder %v459, 113
        %v570 = vsel %vm569, %v566, %v568
        %v571 = vsel %vm569, %v568, %v566
        %s572 = scalar_lea.vmem %s326, 6 [#allocation5]
        %v573 = vld [vmem:[%s572] ss:$8 sm:$0x3]
        %v575 = vlaneseq
        %v576 = vshrl.u32 %v575, 7
        %v577 = vsub.s32 0, %v576
        %v578 = vrot.slane %v573, %v577
        %v579 = vlaneseq
        %v580 = vshrl.u32 %v579, 7
        %v581 = vsub.s32 1, %v580
        %v582 = vrot.slane %v573, %v581
        %v585 = vmul.f32 %v570, %v578
        %v586 = vmul.f32 %v571, %v582
        %587 = vrot.lane.b32.xlu0 %v450, 112
        %v588 = vpop.permute.xlu0 %587
        %589 = vrot.lane.b32.xlu0 %v452, 112
        %v590 = vpop.permute.xlu0 %589
        %vm591 = vcmp.lt.s32.totalorder %v459, 112
        %v592 = vsel %vm591, %v588, %v590
        %v593 = vsel %vm591, %v590, %v588
        %s594 = scalar_lea.vmem %s326, 7 [#allocation5]
        %v595 = vld [vmem:[%s594] ss:$8 sm:$0x3]
        %v597 = vlaneseq
        %v598 = vshrl.u32 %v597, 7
        %v599 = vsub.s32 0, %v598
        %v600 = vrot.slane %v595, %v599
        %v601 = vlaneseq
        %v602 = vshrl.u32 %v601, 7
        %v603 = vsub.s32 1, %v602
        %v604 = vrot.slane %v595, %v603
        %v607 = vmul.f32 %v592, %v600
        %v608 = vmul.f32 %v593, %v604
        %609 = vrot.lane.b32.xlu0 %v450, 111
        %v610 = vpop.permute.xlu0 %609
        %611 = vrot.lane.b32.xlu0 %v452, 111
        %v612 = vpop.permute.xlu0 %611
        %vm613 = vcmp.lt.s32.totalorder %v459, 111
        %v614 = vsel %vm613, %v610, %v612
        %v615 = vsel %vm613, %v612, %v610
        %s616 = scalar_lea.vmem %s326, 16 [#allocation5]
        %v617 = vld [vmem:[%s616] ss:$8 sm:$0x3]
        %v619 = vlaneseq
        %v620 = vshrl.u32 %v619, 7
        %v621 = vsub.s32 0, %v620
        %v622 = vrot.slane %v617, %v621
        %v623 = vlaneseq
        %v624 = vshrl.u32 %v623, 7
        %v625 = vsub.s32 1, %v624
        %v626 = vrot.slane %v617, %v625
        %v629 = vmul.f32 %v614, %v622
        %v630 = vmul.f32 %v615, %v626
        %v631 = vld [vmem:[%s3] sm:$0xff]
        %v632 = vld [vmem:[%s4] sm:$0xff]
        %634 = vset.pattern.permute.xlu0 0
        %635 = vperm.xlu0 %634, %v632
        %v636 = vpop.permute.xlu0 %635
        %vm638 = vcmask 588800
        %v640 = vsel %vm638, %v631, 0
        %642 = vmatprep.subr.mxu0 %v476
        %643 = vmatpush1.msra.mxu0 %v475
        %644 = vmatprep.subr.mxu0 %v498
        %645 = vmatpush1.msra.mxu0 %v497
        %646 = vmatprep.subr.mxu0 %v520
        %647 = vmatpush1.msra.mxu0 %v519
        %648 = vmatprep.subr.mxu0 %v542
        %649 = vmatpush1.msra.mxu0 %v541
        %650 = vmatprep.subr.mxu0 %v452
        %651 = vmatpush1.msra.mxu0 %v450
        %652 = vmatprep.subr.mxu0 %v564
        %653 = vmatpush1.msra.mxu0 %v563
        %654 = vmatprep.subr.mxu0 %v586
        %655 = vmatpush1.msra.mxu0 %v585
        %656 = vmatprep.subr.mxu0 %v608
        %657 = vmatpush1.msra.mxu0 %v607
        %658 = vmatprep.subr.mxu0 %v630
        %659 = vmatpush1.msra.mxu0 %v629
        %660 = vmatprep.subr.mxu0 0.0
        %661 = vmatpush1.msra.mxu0 0.0
        %662 = vmatprep.subr.mxu0 0.0
        %663 = vmatpush1.msra.mxu0 0.0
        %664 = vmatprep.subr.mxu0 0.0
        %665 = vmatpush1.msra.mxu0 0.0
        %666 = vmatprep.subr.mxu0 0.0
        %667 = vmatpush1.msra.mxu0 0.0
        %668 = vmatprep.subr.mxu0 0.0
        %669 = vmatpush1.msra.mxu0 0.0
        %670 = vmatprep.subr.mxu0 0.0
        %671 = vmatpush1.msra.mxu0 0.0
        %672 = vmatprep.subr.mxu0 0.0
        %673 = vmatpush1.msra.mxu0 0.0
        %674 = vmatprep.subr.mxu0 0.0
        %675 = vmatpush1.msra.mxu0 0.0
        %676 = vmatprep.subr.mxu0 0.0
        %677 = vmatpush1.msra.mxu0 0.0
        %678 = vmatprep.subr.mxu0 0.0
        %679 = vmatpush1.msra.mxu0 0.0
        %680 = vmatprep.subr.mxu0 0.0
        %681 = vmatpush1.msra.mxu0 0.0
        %682 = vmatprep.subr.mxu0 0.0
        %683 = vmatpush1.msra.mxu0 0.0
        %684 = vmatprep.subr.mxu0 0.0
        %685 = vmatpush1.msra.mxu0 0.0
        %686 = vmatprep.subr.mxu0 0.0
        %687 = vmatpush1.msra.mxu0 0.0
        %688 = vmatprep.subr.mxu0 0.0
        %689 = vmatpush1.msra.mxu0 0.0
        %690 = vmatprep.subr.mxu0 0.0
        %691 = vmatpush1.msra.mxu0 0.0
        %692 = vmatprep.subr.mxu0 0.0
        %693 = vmatpush1.msra.mxu0 0.0
        %694 = vmatprep.subr.mxu0 0.0
        %695 = vmatpush1.msra.mxu0 0.0
        %696 = vmatprep.subr.mxu0 0.0
        %697 = vmatpush1.msra.mxu0 0.0
        %698 = vmatprep.subr.mxu0 0.0
        %699 = vmatpush1.msra.mxu0 0.0
        %700 = vmatprep.subr.mxu0 0.0
        %701 = vmatpush1.msra.mxu0 0.0
        %702 = vmatprep.subr.mxu0 0.0
        %703 = vmatpush1.msra.mxu0 0.0
        %704 = vmatprep.subr.mxu0 0.0
        %705 = vmatpush1.msra.mxu0 0.0
        %706 = vmatprep.mubr.f32.mxu0 0.0
        %707 = vmatmul.mubr.f32.gmra.mrb[0].mxu0 %v640
        %v708 = vpop.f32.mrb[0].mxu0
        %v709 = vadd.f32 %v636, %v708
        %v710 = vpop.f32.mrb[0].mxu0
        %v711 = vadd.f32 %v636, %v710
        %712 = vdwg.mxu0
        %713 = vrot.lane.b32.xlu0 %v709, 17
        %v714 = vpop.permute.xlu0 %713
        %715 = vrot.lane.b32.xlu0 %v711, 17
        %v716 = vpop.permute.xlu0 %715
        %v717 = vsel %vm460, %v714, %v716
        %v718 = vsel %vm460, %v716, %v714
        %v719 = vmul.f32 %v718, %v468
        %v720 = vmul.f32 %v717, %v472
        %721 = vrot.lane.b32.xlu0 %v709, 16
        %v722 = vpop.permute.xlu0 %721
        %723 = vrot.lane.b32.xlu0 %v711, 16
        %v724 = vpop.permute.xlu0 %723
        %v725 = vsel %vm481, %v722, %v724
        %v726 = vsel %vm481, %v724, %v722
        %v727 = vmul.f32 %v726, %v490
        %v728 = vmul.f32 %v725, %v494
        %729 = vrot.lane.b32.xlu0 %v709, 15
        %v730 = vpop.permute.xlu0 %729
        %731 = vrot.lane.b32.xlu0 %v711, 15
        %v732 = vpop.permute.xlu0 %731
        %v733 = vsel %vm503, %v730, %v732
        %v734 = vsel %vm503, %v732, %v730
        %v735 = vmul.f32 %v734, %v512
        %v736 = vmul.f32 %v733, %v516
        %737 = vrot.lane.b32.xlu0 %v709, 1
        %v738 = vpop.permute.xlu0 %737
        %739 = vrot.lane.b32.xlu0 %v711, 1
        %v740 = vpop.permute.xlu0 %739
        %v741 = vsel %vm525, %v738, %v740
        %v742 = vsel %vm525, %v740, %v738
        %v743 = vmul.f32 %v742, %v534
        %v744 = vmul.f32 %v741, %v538
        %745 = vrot.lane.b32.xlu0 %v709, 127
        %v746 = vpop.permute.xlu0 %745
        %747 = vrot.lane.b32.xlu0 %v711, 127
        %v748 = vpop.permute.xlu0 %747
        %v749 = vsel %vm547, %v746, %v748
        %v750 = vsel %vm547, %v748, %v746
        %v751 = vmul.f32 %v749, %v556
        %v752 = vmul.f32 %v750, %v560
        %753 = vrot.lane.b32.xlu0 %v709, 113
        %v754 = vpop.permute.xlu0 %753
        %755 = vrot.lane.b32.xlu0 %v711, 113
        %v756 = vpop.permute.xlu0 %755
        %v757 = vsel %vm569, %v754, %v756
        %v758 = vsel %vm569, %v756, %v754
        %v759 = vmul.f32 %v757, %v578
        %v760 = vmul.f32 %v758, %v582
        %761 = vrot.lane.b32.xlu0 %v709, 112
        %v762 = vpop.permute.xlu0 %761
        %763 = vrot.lane.b32.xlu0 %v711, 112
        %v764 = vpop.permute.xlu0 %763
        %v765 = vsel %vm591, %v762, %v764
        %v766 = vsel %vm591, %v764, %v762
        %v767 = vmul.f32 %v765, %v600
        %v768 = vmul.f32 %v766, %v604
        %769 = vrot.lane.b32.xlu0 %v709, 111
        %v770 = vpop.permute.xlu0 %769
        %771 = vrot.lane.b32.xlu0 %v711, 111
        %v772 = vpop.permute.xlu0 %771
        %v773 = vsel %vm613, %v770, %v772
        %v774 = vsel %vm613, %v772, %v770
        %v775 = vmul.f32 %v773, %v622
        %v776 = vmul.f32 %v774, %v626
        %v777 = vld [vmem:[%s5] sm:$0xff]
        %v778 = vld [vmem:[%s6] sm:$0xff]
        %780 = vset.pattern.permute.xlu0 0
        %781 = vperm.xlu0 %780, %v778
        %v782 = vpop.permute.xlu0 %781
        %v785 = vsel %vm638, %v777, 0
        %787 = vmatprep.subr.mxu0 %v720
        %788 = vmatpush1.msra.mxu0 %v719
        %789 = vmatprep.subr.mxu0 %v728
        %790 = vmatpush1.msra.mxu0 %v727
        %791 = vmatprep.subr.mxu0 %v736
        %792 = vmatpush1.msra.mxu0 %v735
        %793 = vmatprep.subr.mxu0 %v744
        %794 = vmatpush1.msra.mxu0 %v743
        %795 = vmatprep.subr.mxu0 %v711
        %796 = vmatpush1.msra.mxu0 %v709
        %797 = vmatprep.subr.mxu0 %v752
        %798 = vmatpush1.msra.mxu0 %v751
        %799 = vmatprep.subr.mxu0 %v760
        %800 = vmatpush1.msra.mxu0 %v759
        %801 = vmatprep.subr.mxu0 %v768
        %802 = vmatpush1.msra.mxu0 %v767
        %803 = vmatprep.subr.mxu0 %v776
        %804 = vmatpush1.msra.mxu0 %v775
        %805 = vmatprep.subr.mxu0 0.0
        %806 = vmatpush1.msra.mxu0 0.0
        %807 = vmatprep.subr.mxu0 0.0
        %808 = vmatpush1.msra.mxu0 0.0
        %809 = vmatprep.subr.mxu0 0.0
        %810 = vmatpush1.msra.mxu0 0.0
        %811 = vmatprep.subr.mxu0 0.0
        %812 = vmatpush1.msra.mxu0 0.0
        %813 = vmatprep.subr.mxu0 0.0
        %814 = vmatpush1.msra.mxu0 0.0
        %815 = vmatprep.subr.mxu0 0.0
        %816 = vmatpush1.msra.mxu0 0.0
        %817 = vmatprep.subr.mxu0 0.0
        %818 = vmatpush1.msra.mxu0 0.0
        %819 = vmatprep.subr.mxu0 0.0
        %820 = vmatpush1.msra.mxu0 0.0
        %821 = vmatprep.subr.mxu0 0.0
        %822 = vmatpush1.msra.mxu0 0.0
        %823 = vmatprep.subr.mxu0 0.0
        %824 = vmatpush1.msra.mxu0 0.0
        %825 = vmatprep.subr.mxu0 0.0
        %826 = vmatpush1.msra.mxu0 0.0
        %827 = vmatprep.subr.mxu0 0.0
        %828 = vmatpush1.msra.mxu0 0.0
        %829 = vmatprep.subr.mxu0 0.0
        %830 = vmatpush1.msra.mxu0 0.0
        %831 = vmatprep.subr.mxu0 0.0
        %832 = vmatpush1.msra.mxu0 0.0
        %833 = vmatprep.subr.mxu0 0.0
        %834 = vmatpush1.msra.mxu0 0.0
        %835 = vmatprep.subr.mxu0 0.0
        %836 = vmatpush1.msra.mxu0 0.0
        %837 = vmatprep.subr.mxu0 0.0
        %838 = vmatpush1.msra.mxu0 0.0
        %839 = vmatprep.subr.mxu0 0.0
        %840 = vmatpush1.msra.mxu0 0.0
        %841 = vmatprep.subr.mxu0 0.0
        %842 = vmatpush1.msra.mxu0 0.0
        %843 = vmatprep.subr.mxu0 0.0
        %844 = vmatpush1.msra.mxu0 0.0
        %845 = vmatprep.subr.mxu0 0.0
        %846 = vmatpush1.msra.mxu0 0.0
        %847 = vmatprep.subr.mxu0 0.0
        %848 = vmatpush1.msra.mxu0 0.0
        %849 = vmatprep.subr.mxu0 0.0
        %850 = vmatpush1.msra.mxu0 0.0
        %851 = vmatprep.mubr.f32.mxu0 0.0
        %852 = vmatmul.mubr.f32.gmra.mrb[0].mxu0 %v785
        %v853 = vpop.f32.mrb[0].mxu0
        %v854 = vadd.f32 %v782, %v853
        %v855 = vpop.f32.mrb[0].mxu0
        %v856 = vadd.f32 %v782, %v855
        %857 = vdwg.mxu0
        %v858 = vld [vmem:[%s7] sm:$0x7]
        %vm859 = vcmask 64512
        %v861 = vsel %vm859, %v858, 0
        %863 = vmatprep.subr.mxu0 %v856
        %864 = vmatpush1.msra.mxu0 %v854
        %865 = vmatprep.subr.mxu0 0.0
        %866 = vmatpush1.msra.mxu0 0.0
        %867 = vmatprep.subr.mxu0 0.0
        %868 = vmatpush1.msra.mxu0 0.0
        %869 = vmatprep.subr.mxu0 0.0
        %870 = vmatpush1.msra.mxu0 0.0
        %871 = vmatprep.subr.mxu0 0.0
        %872 = vmatpush1.msra.mxu0 0.0
        %873 = vmatprep.subr.mxu0 0.0
        %874 = vmatpush1.msra.mxu0 0.0
        %875 = vmatprep.subr.mxu0 0.0
        %876 = vmatpush1.msra.mxu0 0.0
        %877 = vmatprep.subr.mxu0 0.0
        %878 = vmatpush1.msra.mxu0 0.0
        %879 = vmatprep.subr.mxu0 0.0
        %880 = vmatpush1.msra.mxu0 0.0
        %881 = vmatprep.subr.mxu0 0.0
        %882 = vmatpush1.msra.mxu0 0.0
        %883 = vmatprep.subr.mxu0 0.0
        %884 = vmatpush1.msra.mxu0 0.0
        %885 = vmatprep.subr.mxu0 0.0
        %886 = vmatpush1.msra.mxu0 0.0
        %887 = vmatprep.subr.mxu0 0.0
        %888 = vmatpush1.msra.mxu0 0.0
        %889 = vmatprep.subr.mxu0 0.0
        %890 = vmatpush1.msra.mxu0 0.0
        %891 = vmatprep.subr.mxu0 0.0
        %892 = vmatpush1.msra.mxu0 0.0
        %893 = vmatprep.subr.mxu0 0.0
        %894 = vmatpush1.msra.mxu0 0.0
        %895 = vmatprep.subr.mxu0 0.0
        %896 = vmatpush1.msra.mxu0 0.0
        %897 = vmatprep.subr.mxu0 0.0
        %898 = vmatpush1.msra.mxu0 0.0
        %899 = vmatprep.subr.mxu0 0.0
        %900 = vmatpush1.msra.mxu0 0.0
        %901 = vmatprep.subr.mxu0 0.0
        %902 = vmatpush1.msra.mxu0 0.0
        %903 = vmatprep.subr.mxu0 0.0
        %904 = vmatpush1.msra.mxu0 0.0
        %905 = vmatprep.subr.mxu0 0.0
        %906 = vmatpush1.msra.mxu0 0.0
        %907 = vmatprep.subr.mxu0 0.0
        %908 = vmatpush1.msra.mxu0 0.0
        %909 = vmatprep.subr.mxu0 0.0
        %910 = vmatpush1.msra.mxu0 0.0
        %911 = vmatprep.subr.mxu0 0.0
        %912 = vmatpush1.msra.mxu0 0.0
        %913 = vmatprep.subr.mxu0 0.0
        %914 = vmatpush1.msra.mxu0 0.0
        %915 = vmatprep.subr.mxu0 0.0
        %916 = vmatpush1.msra.mxu0 0.0
        %917 = vmatprep.subr.mxu0 0.0
        %918 = vmatpush1.msra.mxu0 0.0
        %919 = vmatprep.subr.mxu0 0.0
        %920 = vmatpush1.msra.mxu0 0.0
        %921 = vmatprep.subr.mxu0 0.0
        %922 = vmatpush1.msra.mxu0 0.0
        %923 = vmatprep.subr.mxu0 0.0
        %924 = vmatpush1.msra.mxu0 0.0
        %925 = vmatprep.subr.mxu0 0.0
        %926 = vmatpush1.msra.mxu0 0.0
        %927 = vmatprep.mubr.f32.mxu0 0.0
        %928 = vmatmul.mubr.f32.gmra.mrb[0].mxu0 %v861
        %v929 = vpop.f32.mrb[0].mxu0
        %v930 = vadd.f32 0.0, %v929
        %v931 = vpop.f32.mrb[0].mxu0
        %v932 = vadd.f32 0.0, %v931
        %933 = vdwg.mxu0
        %vm934 = vcmask 1042432
        %v935 = vsel %vm934, %v930, -inf
        %v936 = vrot.slane %v935, 4
        %v937 = vmax.f32 %v935, %v936
        %v938 = vrot.slane %v937, 2
        %v939 = vmax.f32 %v937, %v938
        %v940 = vrot.slane %v939, 1
        %v941 = vmax.f32 %v939, %v940
        %v942 = vsel %vm934, %v932, -inf
        %v943 = vrot.slane %v942, 4
        %v944 = vmax.f32 %v942, %v943
        %v945 = vrot.slane %v944, 2
        %v946 = vmax.f32 %v944, %v945
        %v947 = vrot.slane %v946, 1
        %v948 = vmax.f32 %v946, %v947
        %v949 = vsub.f32 %v930, %v941
        %v950 = vsub.f32 %v932, %v948
        %v951 = vmul.f32 %v949, 1.442695
        %v952 = vpow.pop %v951
        %v953 = vmul.f32 %v950, 1.442695
        %v954 = vpow.pop %v953
        %v955 = vsel %vm934, %v952, 0.0
        %v956 = vrot.slane %v955, 4
        %v957 = vadd.f32 %v955, %v956
        %v958 = vrot.slane %v957, 2
        %v959 = vadd.f32 %v957, %v958
        %v960 = vrot.slane %v959, 1
        %v961 = vadd.f32 %v959, %v960
        %v962 = vsel %vm934, %v954, 0.0
        %v963 = vrot.slane %v962, 4
        %v964 = vadd.f32 %v962, %v963
        %v965 = vrot.slane %v964, 2
        %v966 = vadd.f32 %v964, %v965
        %v967 = vrot.slane %v966, 1
        %v968 = vadd.f32 %v966, %v967
        %v969 = vrcp.pop %v961
        %v970 = vrcp.pop %v968
        %v971 = vmul.f32 %v952, %v969
        %v972 = vmul.f32 %v954, %v970
        %v973 = vlaneseq
        %v974 = vshrl.u32 %v973, 7
        %v975 = vsub.s32 0, %v974
        %v976 = vrot.slane %v971, %v975
        %v977 = vlaneseq
        %v978 = vshrl.u32 %v977, 7
        %v979 = vsub.s32 0, %v978
        %v980 = vrot.slane %v972, %v979
        %v981 = vmul.f32 %v976, %v367
        %v982 = vmul.f32 %v980, %v368
        %v983 = vlaneseq
        %v984 = vshrl.u32 %v983, 7
        %v985 = vsub.s32 1, %v984
        %v986 = vrot.slane %v971, %v985
        %v987 = vlaneseq
        %v988 = vshrl.u32 %v987, 7
        %v989 = vsub.s32 1, %v988
        %v990 = vrot.slane %v972, %v989
        %v991 = vmul.f32 %v986, %v367
        %v992 = vmul.f32 %v990, %v368
        %v995 = vrot.slane %v991, 4
        %v996 = vrot.slane %v992, 4
        %v999 = vadd.f32 %v981, %v995
        %v1000 = vadd.f32 %v982, %v996
        %v1001 = vlaneseq
        %v1002 = vshrl.u32 %v1001, 7
        %v1003 = vsub.s32 2, %v1002
        %v1004 = vrot.slane %v971, %v1003
        %v1005 = vlaneseq
        %v1006 = vshrl.u32 %v1005, 7
        %v1007 = vsub.s32 2, %v1006
        %v1008 = vrot.slane %v972, %v1007
        %v1009 = vmul.f32 %v1004, %v369
        %v1010 = vmul.f32 %v1008, %v370
        %v1011 = vadd.f32 %v999, %v1009
        %v1012 = vadd.f32 %v1000, %v1010
        %v1013 = vsel %vm376, %v1011, 0.0
        %v1014 = vsel %vm376, %v1012, 0.0
        %1015 = vst [vmem:[%s363] sm:$0xff] %v1013
        %1016 = vst [vmem:[%s363 + $0x8] sm:$0xff] %v1014
        %s1017 = sand.u32 %s214, 1
        %s1018 = scalar_lea.sflag [#allocation4], %s1017
        %s1019 = sand.u32 %s214, 1
        %s1020 = smul.addr %s1019, 16
        %s1021 = scalar_lea.vmem [#allocation7], %s1020
        // Predicated region
        $region61: #{tpu_custom_call.1} parent=51 // pred_check
          %p1022 = pneg %p224
        $region62: #{tpu_custom_call.1} parent=51 // pred_check_branch
          %1024 = sbr.rel (%p1022) target = $region64
        $region63: #{tpu_custom_call.1} parent=51 // pred_region
          %s1025 = smul.u32 2, %s28
          %s1027 = ssub.s32 256, 256
          %1028 = vsyncadd %s1018, %s1027
          %s1029 = smul.addr %s1025, 128
          %s1030 = scalar_lea.hbm %s8, %s1029
          %s1032 = sshll.u32 %s1021, 4
          %s1033 = int_to_ptr.vmem [resolvable:$true] %s1032
          %1035 = dma.vmem_to_hbm [thread:$0]  %s1033, 256, %s1030, %s1018
        $region64: #{tpu_custom_call.1} parent=51 // pred_fallthru
          _
      $region52: #{tpu_custom_call.1} parent=5 // pred_fallthru
        _
      %p1036 = scmp.le.s32.totalorder 2, %s23
      // Predicated region
      $region65: #{tpu_custom_call.1} parent=5 // pred_check
        %p1037 = pneg %p1036
      $region66: #{tpu_custom_call.1} parent=5 // pred_check_branch
        %1039 = sbr.rel (%p1037) target = $region68
      $region67: #{tpu_custom_call.1} parent=5 // pred_region
        %s1040 = ssub.s32 %s23, 2
        // Predicated region
        $region69: #{tpu_custom_call.1} parent=67 // pred_check
          %p1041 = pneg %p230
        $region70: #{tpu_custom_call.1} parent=67 // pred_check_branch
          %1043 = sbr.rel (%p1041) target = $region72
        $region71: #{tpu_custom_call.1} parent=67 // pred_region
          %s1044 = sand.u32 %s215, 1
          %s1045 = scalar_lea.sflag [#allocation4], %s1044
          %s1046 = sand.u32 %s215, 1
          %s1047 = smul.addr %s1046, 16
          %s1048 = scalar_lea.vmem [#allocation7], %s1047
          %1049 = dma.done %s1045, 256
        $region72: #{tpu_custom_call.1} parent=67 // pred_fallthru
          _
      $region68: #{tpu_custom_call.1} parent=5 // pred_fallthru
        _
    $region6: #{tpu_custom_call.1} parent=1 // loop_footer
      %s27 = sadd.s32 1, %s23
    $region7: #{tpu_custom_call.1} parent=1 // loop_footer_branch
      %22 = sbr.rel target = $region3
    $region8: #{tpu_custom_call.1} parent=1 // loop_exit
      _
    %1050 = vsyncpa [#allocation3], 1
    %s1051 = scalar_lea.sflag [#allocation3], 1
    %1052 = vsyncpa %s1051, 1
    %1053 = vsyncpa [#allocation6], 1
    %s1054 = scalar_lea.sflag [#allocation6], 1
    %1055 = vsyncpa %s1054, 1
    %1056 = vsyncpa [#allocation4], 1
    %s1057 = scalar_lea.sflag [#allocation4], 1
    %1058 = vsyncpa %s1057, 1

</llo_original>
